<compile_context>
chip_gen: v7x
topology: tpu7x:2x2x1
jax: 0.10.0
libtpu: 0.0.40
codegen_flags: <defaults>
</compile_context>

<pallas_src>
import jax
import jax.numpy as jnp
from jax.experimental import pallas as pl
from jax.experimental.pallas import tpu as pltpu

LANES = 128
SUBLANES = 8
MAX_BLOCK_ROWS = 512  # (512, 128) f32 tile = 256 KiB per buffer


def _inv_log_hinge_kernel(out_ref, tgt_ref, sum_ref, acc_ref):
    i = pl.program_id(0)

    @pl.when(i == 0)
    def _():
        acc_ref[...] = jnp.zeros_like(acc_ref)

    score = out_ref[...] * (2.0 * tgt_ref[...] - 1.0)
    hinge = 1.0 - score
    # |s| + e - 1 >= e - 1 > 1, so log(...) > 0 everywhere: both branches are
    # finite and the jnp.where select never propagates NaN/Inf from the
    # unselected branch.
    inv_log = jnp.e / jnp.log(jnp.abs(score) + (jnp.e - 1.0)) - jnp.e
    # Pure-VPU accumulation per step (hides under the DMA); the expensive
    # cross-lane/cross-sublane reduce happens once at the end.
    acc_ref[...] += jnp.where(score <= 1.0, hinge, inv_log)

    @pl.when(i == pl.num_programs(0) - 1)
    def _():
        sum_ref[...] = jnp.sum(acc_ref[...], keepdims=True)


def _padded_loss_sum(out2d, tgt2d, block_rows):
    R = out2d.shape[0]
    grid = (R // block_rows,)
    total = pl.pallas_call(
        _inv_log_hinge_kernel,
        out_shape=jax.ShapeDtypeStruct((1, 1), jnp.float32),
        grid=grid,
        in_specs=[
            pl.BlockSpec((block_rows, LANES), lambda i: (i, 0)),
            pl.BlockSpec((block_rows, LANES), lambda i: (i, 0)),
        ],
        out_specs=pl.BlockSpec((1, 1), lambda i: (0, 0)),
        scratch_shapes=[pltpu.VMEM((block_rows, LANES), jnp.float32)],
        compiler_params=pltpu.CompilerParams(
            dimension_semantics=("arbitrary",)),  # carried accumulator
    )(out2d, tgt2d)
    return total[0, 0]


def inv_log_hinge(output, target, reduction="mean", max_block_rows=MAX_BLOCK_ROWS):
    """JAX/Pallas port of Inv_Log_Hinge.forward."""
    if reduction not in ("mean", "sum"):
        raise Exception("Sorry, reduction of loss must be mean or sum")
    out_flat = output.reshape(-1).astype(jnp.float32)
    tgt_flat = target.reshape(-1).astype(jnp.float32)
    n = out_flat.shape[0]
    assert tgt_flat.shape[0] == n

    # Largest block (multiple of 8 rows, capped) that covers the input.
    rows_needed = -(-n // LANES)
    block_rows = max(SUBLANES, min(max_block_rows, -(-rows_needed // SUBLANES) * SUBLANES))
    tile = block_rows * LANES
    n_pad = -(-n // tile) * tile
    pad = n_pad - n

    # Zero padding => score = 0 => hinge branch => each padded element adds
    # exactly 1.0 to the sum; corrected below (exact in f32).
    out2d = jnp.pad(out_flat, (0, pad)).reshape(n_pad // LANES, LANES)
    tgt2d = jnp.pad(tgt_flat, (0, pad)).reshape(n_pad // LANES, LANES)

    total = _padded_loss_sum(out2d, tgt2d, block_rows) - float(pad)
    if reduction == "mean":
        return total / float(n)
    return total


def inv_log_hinge_ref(output, target, reduction="mean"):
    """Pure-JAX reference mirroring the PyTorch forward."""
    t = 2.0 * target.astype(jnp.float32) - 1.0
    s = output.astype(jnp.float32) * t
    loss = (s <= 1.0) * (1.0 - s) + (s > 1.0) * (
        jnp.e / jnp.log(jnp.abs(s) + jnp.e - 1.0) - jnp.e)
    return loss.mean() if reduction == "mean" else loss.sum()


if __name__ == "__main__":
    key = jax.random.PRNGKey(0)
    k1, k2, k3, k4, k5, k6 = jax.random.split(key, 6)

    # Case 1: lane-aligned size, 'mean' reduction.
    out1 = jax.random.normal(k1, (512, 1), dtype=jnp.float32) * 3.0
    tgt1 = jax.random.bernoulli(k2, 0.5, (512, 1)).astype(jnp.float32)
    l1 = jax.block_until_ready(inv_log_hinge(out1, tgt1, "mean"))
    r1 = jax.block_until_ready(inv_log_hinge_ref(out1, tgt1, "mean"))
    assert jnp.allclose(l1, r1, rtol=1e-4, atol=1e-4), (l1, r1)

    # Case 2: ragged size exercising the zero-pad correction, 'sum' reduction.
    out2 = jax.random.normal(k3, (50, 3), dtype=jnp.float32) * 3.0
    tgt2 = jax.random.bernoulli(k4, 0.5, (50, 3)).astype(jnp.float32)
    l2 = jax.block_until_ready(inv_log_hinge(out2, tgt2, "sum"))
    r2 = jax.block_until_ready(inv_log_hinge_ref(out2, tgt2, "sum"))
    assert jnp.allclose(l2, r2, rtol=1e-4, atol=1e-4), (l2, r2)

    # Case 3: force a multi-step grid (small blocks) to exercise the carried
    # VMEM accumulator across grid iterations.
    out3 = jax.random.normal(k5, (2, 4, 16, 16), dtype=jnp.float32) * 3.0
    tgt3 = jax.random.bernoulli(k6, 0.5, (2, 4, 16, 16)).astype(jnp.float32)
    l3 = jax.block_until_ready(inv_log_hinge(out3, tgt3, "mean", max_block_rows=8))
    r3 = jax.block_until_ready(inv_log_hinge_ref(out3, tgt3, "mean"))
    assert jnp.allclose(l3, r3, rtol=1e-4, atol=1e-4), (l3, r3)

    print("KERNEL_OK")
</pallas_src>

<mosaic_0001>
module attributes {stable_mosaic.version = 11 : i64} {
  func.func @_inv_log_hinge_kernel(%arg0: i32, %arg1: memref<8x128xf32, #tpu.memory_space<vmem>>, %arg2: memref<8x128xf32, #tpu.memory_space<vmem>>, %arg3: memref<1x1xf32, #tpu.memory_space<vmem>>, %arg4: memref<8x128xf32, #tpu.memory_space<vmem>>) attributes {dimension_semantics = [#tpu.dimension_semantics<arbitrary>], iteration_bounds = array<i64: 1>, scalar_prefetch = 0 : i64, scratch_operands = 1 : i64, tpu.core_type = #tpu.core_type<tc>, window_params = [{transform_indices = @transform_0, window_bounds = array<i64: 8, 128>}, {transform_indices = @transform_1, window_bounds = array<i64: 8, 128>}, {pipeline_mode = #tpu.pipeline_mode<synchronous>, transform_indices = @transform_2, window_bounds = array<i64: 1, 1>}]} {
    %c0_i32 = arith.constant 0 : i32
    %0 = arith.cmpi eq, %arg0, %c0_i32 : i32
    %1 = arith.extui %0 : i1 to i32
    %c0_i32_0 = arith.constant 0 : i32
    %2 = arith.cmpi ne, %1, %c0_i32_0 : i32
    scf.if %2 {
      %cst_16 = arith.constant 0.000000e+00 : f32
      %29 = vector.broadcast %cst_16 : f32 to vector<8x128xf32>
      %c0_17 = arith.constant 0 : index
      %c0_18 = arith.constant 0 : index
      %30 = vector.load %arg4[%c0_17, %c0_18] : memref<8x128xf32, #tpu.memory_space<vmem>>, vector<8x128xf32>
      tpu.vector_store %arg4[%c0_17, %c0_18], %29 {strides = array<i32>} : memref<8x128xf32, #tpu.memory_space<vmem>>, vector<8x128xf32>,
    } else {
    }
    %c0 = arith.constant 0 : index
    %c0_1 = arith.constant 0 : index
    %3 = vector.load %arg1[%c0, %c0_1] : memref<8x128xf32, #tpu.memory_space<vmem>>, vector<8x128xf32>
    %c0_2 = arith.constant 0 : index
    %c0_3 = arith.constant 0 : index
    %4 = vector.load %arg2[%c0_2, %c0_3] : memref<8x128xf32, #tpu.memory_space<vmem>>, vector<8x128xf32>
    %cst = arith.constant 2.000000e+00 : f32
    %5 = vector.broadcast %cst : f32 to vector<8x128xf32>
    %6 = arith.mulf %5, %4 : vector<8x128xf32>
    %cst_4 = arith.constant 1.000000e+00 : f32
    %7 = vector.broadcast %cst_4 : f32 to vector<8x128xf32>
    %8 = arith.subf %6, %7 : vector<8x128xf32>
    %9 = arith.mulf %3, %8 : vector<8x128xf32>
    %cst_5 = arith.constant 1.000000e+00 : f32
    %10 = vector.broadcast %cst_5 : f32 to vector<8x128xf32>
    %11 = arith.subf %10, %9 : vector<8x128xf32>
    %12 = math.absf %9 : vector<8x128xf32>
    %cst_6 = arith.constant 1.71828187 : f32
    %13 = vector.broadcast %cst_6 : f32 to vector<8x128xf32>
    %14 = arith.addf %12, %13 : vector<8x128xf32>
    %15 = math.log %14 : vector<8x128xf32>
    %cst_7 = arith.constant 2.71828175 : f32
    %16 = vector.broadcast %cst_7 : f32 to vector<8x128xf32>
    %17 = arith.divf %16, %15 : vector<8x128xf32>
    %cst_8 = arith.constant 2.71828175 : f32
    %18 = vector.broadcast %cst_8 : f32 to vector<8x128xf32>
    %19 = arith.subf %17, %18 : vector<8x128xf32>
    %c0_9 = arith.constant 0 : index
    %c0_10 = arith.constant 0 : index
    %20 = vector.load %arg4[%c0_9, %c0_10] : memref<8x128xf32, #tpu.memory_space<vmem>>, vector<8x128xf32>
    %cst_11 = arith.constant 1.000000e+00 : f32
    %21 = vector.broadcast %cst_11 : f32 to vector<8x128xf32>
    %22 = arith.cmpf ole, %9, %21 : vector<8x128xf32>
    %23 = arith.select %22, %11, %19 : vector<8x128xi1>, vector<8x128xf32>
    %24 = arith.addf %20, %23 : vector<8x128xf32>
    %c0_12 = arith.constant 0 : index
    %c0_13 = arith.constant 0 : index
    %25 = vector.load %arg4[%c0_12, %c0_13] : memref<8x128xf32, #tpu.memory_space<vmem>>, vector<8x128xf32>
    tpu.vector_store %arg4[%c0_12, %c0_13], %24 {strides = array<i32>} : memref<8x128xf32, #tpu.memory_space<vmem>>, vector<8x128xf32>,
    %c0_i32_14 = arith.constant 0 : i32
    %26 = arith.cmpi eq, %arg0, %c0_i32_14 : i32
    %27 = arith.extui %26 : i1 to i32
    %c0_i32_15 = arith.constant 0 : i32
    %28 = arith.cmpi ne, %27, %c0_i32_15 : i32
    scf.if %28 {
      %c0_16 = arith.constant 0 : index
      %c0_17 = arith.constant 0 : index
      %29 = vector.load %arg4[%c0_16, %c0_17] : memref<8x128xf32, #tpu.memory_space<vmem>>, vector<8x128xf32>
      %30 = vector.shape_cast %29 : vector<8x128xf32> to vector<1x8x128xf32>
      %cst_18 = arith.constant dense<0.000000e+00> : vector<1xf32>
      %31 = vector.multi_reduction <add>, %30, %cst_18 [1, 2] : vector<1x8x128xf32> to vector<1xf32>
      %32 = vector.shape_cast %31 : vector<1xf32> to vector<1x1x1xf32>
      %33 = vector.extract %32[0, 0, 0] : f32 from vector<1x1x1xf32>
      %34 = vector.broadcast %33 : f32 to vector<1x1xf32>
      %c0_19 = arith.constant 0 : index
      %c0_20 = arith.constant 0 : index
      %35 = vector.load %arg3[%c0_19, %c0_20] : memref<1x1xf32, #tpu.memory_space<vmem>>, vector<1x1xf32>
      tpu.vector_store %arg3[%c0_19, %c0_20], %34 {strides = array<i32>} : memref<1x1xf32, #tpu.memory_space<vmem>>, vector<1x1xf32>,
    } else {
    }
    return
  }
  func.func @transform_0(%arg0: i32) -> (i32, i32) {
    %c0_i32 = arith.constant 0 : i32
    %c0_i32_0 = arith.constant 0 : i32
    return %arg0, %c0_i32 : i32, i32
  }
  func.func @transform_1(%arg0: i32) -> (i32, i32) {
    %c0_i32 = arith.constant 0 : i32
    %c0_i32_0 = arith.constant 0 : i32
    return %arg0, %c0_i32 : i32, i32
  }
  func.func @transform_2(%arg0: i32) -> (i32, i32) {
    %c0_i32 = arith.constant 0 : i32
    %c0_i32_0 = arith.constant 0 : i32
    %c0_i32_1 = arith.constant 0 : i32
    return %c0_i32, %c0_i32_0 : i32, i32
  }
}

</mosaic_0001>

<llo_original>
// kernel: tpu_custom_call.1
$region0: #{tpu_custom_call.1}
  #allocation0 [shape = 'u32[]', space=smem, size = 0x4, offset = 0x4, fixed_abs, tag = 'smem constant byte address 0x4 - core index']
  #allocation1 [shape = 'u32[144,128]{1,0:T(1,128)}', space=vmem, size = 0x12000, scoped, tag = 'internal scratch']
  #allocation2 [shape = 'f32[8,128]{1,0:T(8,128)}', space=vmem, size = 0x1000, scoped, tag = 'scratch operand']
  %s0 = inlined_call_operand.hbm [shape: f32[8,128], index: 0, kind: input, shape index: {}]
  %s1 = inlined_call_operand.hbm [shape: f32[8,128], index: 1, kind: input, shape index: {}]
  %s2 = inlined_call_operand.hbm [shape: f32[1,1], index: 2, kind: output, shape index: {}]
  %s3 = sld [smem:[#allocation0]]
  $region34: #{tpu_custom_call.1} parent=0
    _
  %s5 = ssub.s32 1, %s3
  %s6 = scalar_select 0, %s5, %s3
  $region1: #{tpu_custom_call.1} parent=0
    #allocation3 [shape = 'u8[4096]{0}', space=vmem, size = 0x1000, scoped, tag = 'input window, operand 0, single buffered']
    #allocation4 [shape = 's32[1]{0}', space=sflag, size = 0x4, scoped, tag = 'scoped memory for tpu_custom_call.1']
    #allocation5 [shape = 's32[1]{0}', space=sflag, size = 0x4, scoped, tag = 'scoped memory for tpu_custom_call.1']
    #allocation6 [shape = 'u8[4096]{0}', space=vmem, size = 0x1000, scoped, tag = 'input window, operand 1, single buffered']
    #allocation7 [shape = 's32[1]{0}', space=sflag, size = 0x4, scoped, tag = 'scoped memory for tpu_custom_call.1']
    #allocation8 [shape = 'u8[512]{0}', space=vmem, size = 0x400, scoped, tag = 'output window, operand 0, single buffered']
    %7 = vsyncpa [#allocation4], 0
    %8 = vsyncpa [#allocation7], 0
    %9 = vsyncpa [#allocation5], 0
    // Predicated region
    $region2: #{tpu_custom_call.1} parent=1 // pred_check
      _
    $region3: #{tpu_custom_call.1} parent=1 // pred_check_branch
      %11 = sbr.rel (0) target = $region5
    $region4: #{tpu_custom_call.1} parent=1 // pred_region
      %s13 = ssub.s32 128, 128
      %14 = vsyncadd [#allocation4], %s13
      %s16 = sshll.u32 [#allocation3], 4
      %s17 = int_to_ptr.vmem [resolvable:$true] %s16
      %19 = dma.hbm_to_vmem [thread:$0]  %s0, 128, %s17, [#allocation4]
    $region5: #{tpu_custom_call.1} parent=1 // pred_fallthru
      _
    // Predicated region
    $region6: #{tpu_custom_call.1} parent=1 // pred_check
      _
    $region7: #{tpu_custom_call.1} parent=1 // pred_check_branch
      %21 = sbr.rel (0) target = $region9
    $region8: #{tpu_custom_call.1} parent=1 // pred_region
      %s23 = ssub.s32 128, 128
      %24 = vsyncadd [#allocation7], %s23
      %s26 = sshll.u32 [#allocation6], 4
      %s27 = int_to_ptr.vmem [resolvable:$true] %s26
      %29 = dma.hbm_to_vmem [thread:$0]  %s1, 128, %s27, [#allocation7]
    $region9: #{tpu_custom_call.1} parent=1 // pred_fallthru
      _
    // Predicated region
    $region10: #{tpu_custom_call.1} parent=1 // pred_check
      _
    $region11: #{tpu_custom_call.1} parent=1 // pred_check_branch
      %31 = sbr.rel (0) target = $region13
    $region12: #{tpu_custom_call.1} parent=1 // pred_region
      %32 = dma.done [#allocation4], 128
    $region13: #{tpu_custom_call.1} parent=1 // pred_fallthru
      _
    // Predicated region
    $region14: #{tpu_custom_call.1} parent=1 // pred_check
      _
    $region15: #{tpu_custom_call.1} parent=1 // pred_check_branch
      %34 = sbr.rel (0) target = $region17
    $region16: #{tpu_custom_call.1} parent=1 // pred_region
      %35 = dma.done [#allocation7], 128
    $region17: #{tpu_custom_call.1} parent=1 // pred_fallthru
      _
    %p36 = scmp.eq.s32.totalorder 0, 0
    // Predicated region
    $region18: #{tpu_custom_call.1} parent=1 // pred_check
      %p37 = pneg %p36
    $region19: #{tpu_custom_call.1} parent=1 // pred_check_branch
      %39 = sbr.rel (%p37) target = $region21
    $region20: #{tpu_custom_call.1} parent=1 // pred_region
      %40 = vst [vmem:[#allocation2] sm:$0xff] 0.0
    $region21: #{tpu_custom_call.1} parent=1 // pred_fallthru
      _
    %v41 = vld [vmem:[#allocation3] sm:$0xff]
    %v42 = vld [vmem:[#allocation6] sm:$0xff]
    %v43 = vmul.f32 %v42, 2.0
    %v44 = vsub.f32 %v43, 1.0
    %v45 = vmul.f32 %v41, %v44
    %v46 = vsub.f32 1.0, %v45
    %v47 = vand.u32 2147483647, %v45
    %v48 = vadd.f32 %v47, 1.7182819
    %v49 = vlog2.pop %v48
    %v50 = vmul.f32 %v49, 0.6931472
    %v51 = vrcp.pop %v50
    %v52 = vmul.f32 2.7182817, %v51
    %v53 = vsub.f32 %v52, 2.7182817
    %v54 = vld [vmem:[#allocation2] sm:$0xff]
    %vm55 = vcmp.le.f32.partialorder %v45, 1.0
    %v56 = vsel %vm55, %v46, %v53
    %v57 = vadd.f32 %v54, %v56
    %58 = vst [vmem:[#allocation2] sm:$0xff] %v57
    // Predicated region
    $region22: #{tpu_custom_call.1} parent=1 // pred_check
      %p59 = pneg %p36
    $region23: #{tpu_custom_call.1} parent=1 // pred_check_branch
      %61 = sbr.rel (%p59) target = $region25
    $region24: #{tpu_custom_call.1} parent=1 // pred_region
      %v62 = vld [vmem:[#allocation2] sm:$0xff]
      %63 = vadd.xlane.f32.xlu0 %v62
      %v64 = vpop.xlane.xlu0 %63
      %v65 = vrot.slane %v64, 4
      %v66 = vadd.f32 %v64, %v65
      %v67 = vrot.slane %v66, 2
      %v68 = vadd.f32 %v66, %v67
      %v69 = vrot.slane %v68, 1
      %v70 = vadd.f32 %v68, %v69
      %s71 = vtos %v70
      %v72 = vstv %s71
      %vm73 = vcmask 0
      %74 = vst.msk [vmem:[#allocation8] sm:$0x1] %vm73, %v72
    $region25: #{tpu_custom_call.1} parent=1 // pred_fallthru
      _
    // Predicated region
    $region26: #{tpu_custom_call.1} parent=1 // pred_check
      _
    $region27: #{tpu_custom_call.1} parent=1 // pred_check_branch
      %76 = sbr.rel (0) target = $region29
    $region28: #{tpu_custom_call.1} parent=1 // pred_region
      %s78 = ssub.s32 16, 16
      %79 = vsyncadd [#allocation5], %s78
      %s81 = sshll.u32 [#allocation8], 4
      %s82 = int_to_ptr.vmem [resolvable:$true] %s81
      %84 = dma.vmem_to_hbm [thread:$0]  %s82, 16, %s2, [#allocation5]
    $region29: #{tpu_custom_call.1} parent=1 // pred_fallthru
      _
    // Predicated region
    $region30: #{tpu_custom_call.1} parent=1 // pred_check
      _
    $region31: #{tpu_custom_call.1} parent=1 // pred_check_branch
      %86 = sbr.rel (0) target = $region33
    $region32: #{tpu_custom_call.1} parent=1 // pred_region
      %87 = dma.done [#allocation5], 16
    $region33: #{tpu_custom_call.1} parent=1 // pred_fallthru
      _
    %88 = vsyncpa [#allocation4], 1
    %89 = vsyncpa [#allocation7], 1
    %90 = vsyncpa [#allocation5], 1

</llo_original>
